<compile_context>
chip_gen: v7x
topology: tpu7x:2x2x1
jax: 0.10.0
libtpu: 0.0.40
codegen_flags: <defaults>
</compile_context>

<pallas_src>
import jax
import jax.numpy as jnp
from jax.experimental import pallas as pl
from jax.experimental.pallas import tpu as pltpu

HIDDEN = 128


def _round_up(x, m):
    return ((x + m - 1) // m) * m


def _ddqn_kernel(x_ref, w1_ref, wh_ref, w2_ref, b_ref, out_ref):
    # Biases (packed into one (8, 256) slab).
    b1 = b_ref[0:1, 0:HIDDEN]        # (1, 128)
    bh = b_ref[1:2, :]               # (1, 256)  = [ba1 | bv1]
    b2 = b_ref[2:3, 0:HIDDEN]        # (1, 128)  fused second-layer bias

    x = x_ref[...]                   # (TB, num_inputs)

    # Feature layer: Linear + ReLU                      -> (TB, 128)
    h = jnp.dot(x, w1_ref[...], preferred_element_type=jnp.float32) + b1
    h = jnp.maximum(h, 0.0)

    # Both head first-layers fused into one matmul      -> (TB, 256)
    y = jnp.dot(h, wh_ref[...], preferred_element_type=jnp.float32) + bh
    y = jnp.maximum(y, 0.0)

    # Fused second layer (adv + val in cols 0:A, per-row adv-sum in col A,
    # zeros elsewhere) — one lane-dense 256x128 matmul, unmasked 128-lane store.
    out_ref[...] = jnp.dot(y, w2_ref[...], preferred_element_type=jnp.float32) + b2


def pack_params(p):
    """Pack the 10 PyTorch-style tensors into 4 lane-dense slabs for the kernel."""
    A = p["wa2"].shape[1]
    assert A + 1 <= HIDDEN, "num_outputs must fit (with adv-sum column) in 128 lanes"

    w1 = p["w1"].astype(jnp.float32)                                    # (in, 128)
    w_heads = jnp.concatenate([p["wa1"], p["wv1"]], axis=1)             # (128, 256)
    w_heads = w_heads.astype(jnp.float32)

    # Fused second layer (256 -> 128 padded).
    w2 = jnp.zeros((2 * HIDDEN, HIDDEN), jnp.float32)
    w2 = w2.at[:HIDDEN, :A].set(p["wa2"])                               # adv part
    w2 = w2.at[HIDDEN:, :A].set(jnp.tile(p["wv2"], (1, A)))             # val broadcast
    w2 = w2.at[:HIDDEN, A].set(jnp.sum(p["wa2"], axis=1))               # row-sum(adv)

    b_pack = jnp.zeros((8, 2 * HIDDEN), jnp.float32)
    b_pack = b_pack.at[0, :HIDDEN].set(p["b1"][0])
    b_pack = b_pack.at[1, :HIDDEN].set(p["ba1"][0])
    b_pack = b_pack.at[1, HIDDEN:].set(p["bv1"][0])
    b_pack = b_pack.at[2, :A].set(p["ba2"][0] + p["bv2"][0, 0])         # adv+val bias
    b_pack = b_pack.at[2, A].set(jnp.sum(p["ba2"]))                     # adv-sum bias

    return w1, w_heads, w2, b_pack


def ddqn_forward(x, params, *, block_rows=256):
    """x: (B, num_inputs) float32. params: dict of torch-style weights.
    Returns (B, num_outputs) == value + advantage - advantage.mean()."""
    B, num_inputs = x.shape
    A = params["wa2"].shape[1]

    w1, w_heads, w2, b_pack = pack_params(params)

    # Batch tile: biggest of (block_rows, padded B), multiple of 8.
    tb = block_rows if B >= block_rows else max(8, _round_up(B, 8))
    b_pad = _round_up(B, tb)
    if b_pad != B:
        x = jnp.pad(x, ((0, b_pad - B), (0, 0)))

    grid = (b_pad // tb,)

    out_pad = pl.pallas_call(
        _ddqn_kernel,
        out_shape=jax.ShapeDtypeStruct((b_pad, HIDDEN), jnp.float32),
        grid=grid,
        in_specs=[
            pl.BlockSpec((tb, num_inputs), lambda i: (i, 0)),        # x (tiled)
            pl.BlockSpec((num_inputs, HIDDEN), lambda i: (0, 0)),    # W1 (resident)
            pl.BlockSpec((HIDDEN, 2 * HIDDEN), lambda i: (0, 0)),    # W_heads
            pl.BlockSpec((2 * HIDDEN, HIDDEN), lambda i: (0, 0)),    # W2 fused
            pl.BlockSpec((8, 2 * HIDDEN), lambda i: (0, 0)),         # biases
        ],
        out_specs=pl.BlockSpec((tb, HIDDEN), lambda i: (i, 0)),
        compiler_params=pltpu.CompilerParams(
            dimension_semantics=("parallel",),
        ),
    )(x, w1, w_heads, w2, b_pack)

    # Finalize: global mean over ALL adv elements (matches torch .mean()),
    # using the per-row adv sums the kernel wrote into column A.
    q_plus_v = out_pad[:B, :A]                       # val + adv
    adv_mean = jnp.sum(out_pad[:B, A]) / (B * A)     # scalar mean over B*A
    return q_plus_v - adv_mean


def init_params(key, num_inputs, num_outputs):
    """PyTorch-Linear-like init: U(-1/sqrt(fan_in), +1/sqrt(fan_in)).
    Weights stored as (in, out) — already transposed for x @ W."""
    def linear(k, fan_in, fan_out):
        kw, kb = jax.random.split(k)
        bound = 1.0 / (fan_in ** 0.5)
        w = jax.random.uniform(kw, (fan_in, fan_out), jnp.float32, -bound, bound)
        b = jax.random.uniform(kb, (1, fan_out), jnp.float32, -bound, bound)
        return w, b

    k1, k2, k3, k4, k5 = jax.random.split(key, 5)
    w1, b1 = linear(k1, num_inputs, HIDDEN)
    wa1, ba1 = linear(k2, HIDDEN, HIDDEN)
    wa2, ba2 = linear(k3, HIDDEN, num_outputs)
    wv1, bv1 = linear(k4, HIDDEN, HIDDEN)
    wv2, bv2 = linear(k5, HIDDEN, 1)
    return dict(w1=w1, b1=b1, wa1=wa1, ba1=ba1, wa2=wa2, ba2=ba2,
                wv1=wv1, bv1=bv1, wv2=wv2, bv2=bv2)


def ddqn_reference(x, p):
    """Pure-JAX reference mirroring the PyTorch module."""
    h = jnp.maximum(x @ p["w1"] + p["b1"], 0.0)
    adv = jnp.maximum(h @ p["wa1"] + p["ba1"], 0.0) @ p["wa2"] + p["ba2"]
    val = jnp.maximum(h @ p["wv1"] + p["bv1"], 0.0) @ p["wv2"] + p["bv2"]
    return val + adv - jnp.mean(adv)


if __name__ == "__main__":
    # LunarLander-v2: observation dim 8, action dim 4.
    # batch=300 -> exercises multi-tile grid (2 tiles of 256) + padding path.
    num_inputs, num_outputs, batch = 8, 4, 300

    key = jax.random.PRNGKey(0)
    k_params, k_x = jax.random.split(key)
    params = init_params(k_params, num_inputs, num_outputs)
    x = jax.random.normal(k_x, (batch, num_inputs), jnp.float32)

    out = jax.block_until_ready(ddqn_forward(x, params))

    ref = ddqn_reference(x, params)
    assert out.shape == (batch, num_outputs)
    assert jnp.allclose(out, ref, atol=1e-4, rtol=1e-4), float(jnp.max(jnp.abs(out - ref)))

    print("KERNEL_OK")
</pallas_src>

<mosaic_0001>
module attributes {stable_mosaic.version = 11 : i64} {
  func.func @_ddqn_kernel(%arg0: i32, %arg1: memref<256x8xf32, #tpu.memory_space<vmem>>, %arg2: memref<8x128xf32, #tpu.memory_space<vmem>>, %arg3: memref<128x256xf32, #tpu.memory_space<vmem>>, %arg4: memref<256x128xf32, #tpu.memory_space<vmem>>, %arg5: memref<8x256xf32, #tpu.memory_space<vmem>>, %arg6: memref<256x128xf32, #tpu.memory_space<vmem>>) attributes {dimension_semantics = [#tpu.dimension_semantics<parallel>], iteration_bounds = array<i64: 2>, scalar_prefetch = 0 : i64, scratch_operands = 0 : i64, tpu.core_type = #tpu.core_type<tc>, window_params = [{transform_indices = @transform_0, window_bounds = array<i64: 256, 8>}, {pipeline_mode = #tpu.pipeline_mode<synchronous>, transform_indices = @transform_1, window_bounds = array<i64: 8, 128>}, {pipeline_mode = #tpu.pipeline_mode<synchronous>, transform_indices = @transform_2, window_bounds = array<i64: 128, 256>}, {pipeline_mode = #tpu.pipeline_mode<synchronous>, transform_indices = @transform_3, window_bounds = array<i64: 256, 128>}, {pipeline_mode = #tpu.pipeline_mode<synchronous>, transform_indices = @transform_4, window_bounds = array<i64: 8, 256>}, {transform_indices = @transform_5, window_bounds = array<i64: 256, 128>}]} {
    %c0 = arith.constant 0 : index
    %c0_0 = arith.constant 0 : index
    %0 = vector.load %arg5[%c0, %c0_0] : memref<8x256xf32, #tpu.memory_space<vmem>>, vector<1x128xf32>
    %c1 = arith.constant 1 : index
    %c0_1 = arith.constant 0 : index
    %1 = vector.load %arg5[%c1, %c0_1] : memref<8x256xf32, #tpu.memory_space<vmem>>, vector<1x256xf32>
    %c2 = arith.constant 2 : index
    %c0_2 = arith.constant 0 : index
    %2 = vector.load %arg5[%c2, %c0_2] : memref<8x256xf32, #tpu.memory_space<vmem>>, vector<1x128xf32>
    %c0_3 = arith.constant 0 : index
    %c0_4 = arith.constant 0 : index
    %3 = vector.load %arg1[%c0_3, %c0_4] : memref<256x8xf32, #tpu.memory_space<vmem>>, vector<256x8xf32>
    %c0_5 = arith.constant 0 : index
    %c0_6 = arith.constant 0 : index
    %4 = vector.load %arg2[%c0_5, %c0_6] : memref<8x128xf32, #tpu.memory_space<vmem>>, vector<8x128xf32>
    %cst = arith.constant dense<0.000000e+00> : vector<256x128xf32>
    %5 = tpu.matmul %3, %4, %cst {dimension_numbers = #tpu.dot_dimension_numbers<[1], [0], [0], [1], [0, 0, 1, 1], [], []>} : vector<256x8xf32>, vector<8x128xf32>, vector<256x128xf32> -> vector<256x128xf32>
    %6 = vector.broadcast %0 : vector<1x128xf32> to vector<256x128xf32>
    %7 = arith.addf %5, %6 : vector<256x128xf32>
    %cst_7 = arith.constant 0.000000e+00 : f32
    %8 = vector.broadcast %cst_7 : f32 to vector<256x128xf32>
    %9 = arith.maximumf %7, %8 : vector<256x128xf32>
    %c0_8 = arith.constant 0 : index
    %c0_9 = arith.constant 0 : index
    %10 = vector.load %arg3[%c0_8, %c0_9] : memref<128x256xf32, #tpu.memory_space<vmem>>, vector<128x256xf32>
    %cst_10 = arith.constant dense<0.000000e+00> : vector<256x256xf32>
    %11 = tpu.matmul %9, %10, %cst_10 {dimension_numbers = #tpu.dot_dimension_numbers<[1], [0], [0], [1], [0, 0, 1, 1], [], []>} : vector<256x128xf32>, vector<128x256xf32>, vector<256x256xf32> -> vector<256x256xf32>
    %12 = vector.broadcast %1 : vector<1x256xf32> to vector<256x256xf32>
    %13 = arith.addf %11, %12 : vector<256x256xf32>
    %cst_11 = arith.constant 0.000000e+00 : f32
    %14 = vector.broadcast %cst_11 : f32 to vector<256x256xf32>
    %15 = arith.maximumf %13, %14 : vector<256x256xf32>
    %c0_12 = arith.constant 0 : index
    %c0_13 = arith.constant 0 : index
    %16 = vector.load %arg4[%c0_12, %c0_13] : memref<256x128xf32, #tpu.memory_space<vmem>>, vector<256x128xf32>
    %cst_14 = arith.constant dense<0.000000e+00> : vector<256x128xf32>
    %17 = tpu.matmul %15, %16, %cst_14 {dimension_numbers = #tpu.dot_dimension_numbers<[1], [0], [0], [1], [0, 0, 1, 1], [], []>} : vector<256x256xf32>, vector<256x128xf32>, vector<256x128xf32> -> vector<256x128xf32>
    %18 = vector.broadcast %2 : vector<1x128xf32> to vector<256x128xf32>
    %19 = arith.addf %17, %18 : vector<256x128xf32>
    %c0_15 = arith.constant 0 : index
    %c0_16 = arith.constant 0 : index
    %20 = vector.load %arg6[%c0_15, %c0_16] : memref<256x128xf32, #tpu.memory_space<vmem>>, vector<256x128xf32>
    tpu.vector_store %arg6[%c0_15, %c0_16], %19 {strides = array<i32>} : memref<256x128xf32, #tpu.memory_space<vmem>>, vector<256x128xf32>,
    return
  }
  func.func @transform_0(%arg0: i32) -> (i32, i32) {
    %c0_i32 = arith.constant 0 : i32
    %c0_i32_0 = arith.constant 0 : i32
    return %arg0, %c0_i32 : i32, i32
  }
  func.func @transform_1(%arg0: i32) -> (i32, i32) {
    %c0_i32 = arith.constant 0 : i32
    %c0_i32_0 = arith.constant 0 : i32
    %c0_i32_1 = arith.constant 0 : i32
    return %c0_i32, %c0_i32_0 : i32, i32
  }
  func.func @transform_2(%arg0: i32) -> (i32, i32) {
    %c0_i32 = arith.constant 0 : i32
    %c0_i32_0 = arith.constant 0 : i32
    %c0_i32_1 = arith.constant 0 : i32
    return %c0_i32, %c0_i32_0 : i32, i32
  }
  func.func @transform_3(%arg0: i32) -> (i32, i32) {
    %c0_i32 = arith.constant 0 : i32
    %c0_i32_0 = arith.constant 0 : i32
    %c0_i32_1 = arith.constant 0 : i32
    return %c0_i32, %c0_i32_0 : i32, i32
  }
  func.func @transform_4(%arg0: i32) -> (i32, i32) {
    %c0_i32 = arith.constant 0 : i32
    %c0_i32_0 = arith.constant 0 : i32
    %c0_i32_1 = arith.constant 0 : i32
    return %c0_i32, %c0_i32_0 : i32, i32
  }
  func.func @transform_5(%arg0: i32) -> (i32, i32) {
    %c0_i32 = arith.constant 0 : i32
    %c0_i32_0 = arith.constant 0 : i32
    return %arg0, %c0_i32 : i32, i32
  }
}

</mosaic_0001>

<llo_original>
// kernel: tpu_custom_call.1
$region0: #{tpu_custom_call.1}
  #allocation0 [shape = 'u32[]', space=smem, size = 0x4, offset = 0x4, fixed_abs, tag = 'smem constant byte address 0x4 - core index']
  #allocation1 [shape = 'u32[144,128]{1,0:T(1,128)}', space=vmem, size = 0x12000, scoped, tag = 'internal scratch']
  %s0 = inlined_call_operand.vmem [shape: f32[512,8], index: 0, kind: input, shape index: {}]
  %s1 = inlined_call_operand.vmem [shape: f32[8,128], index: 1, kind: input, shape index: {}]
  %s2 = inlined_call_operand.vmem [shape: f32[128,256], index: 2, kind: input, shape index: {}]
  %s3 = inlined_call_operand.vmem [shape: f32[256,128], index: 3, kind: input, shape index: {}]
  %s4 = inlined_call_operand.vmem [shape: f32[8,256], index: 4, kind: input, shape index: {}]
  %s5 = inlined_call_operand.hbm [shape: f32[512,128], index: 5, kind: output, shape index: {}]
  %s6 = sld [smem:[#allocation0]]
  $region53: #{tpu_custom_call.1} parent=0
    _
  %s8 = ssub.s32 1, %s6
  %s9 = scalar_select 0, %s8, %s6
  $region1: #{tpu_custom_call.1} parent=0
    #allocation2 [shape = 'u8[262144]{0}', space=vmem, size = 0x40000, scoped, tag = 'output window, operand 0']
    #allocation3 [shape = 's32[2]{0}', space=sflag, size = 0x8, scoped, tag = 'scoped memory for tpu_custom_call.1']
    %10 = vsyncpa [#allocation3], 0
    %s11 = scalar_lea.sflag [#allocation3], 1
    %12 = vsyncpa %s11, 0
    loop: start=0, step=1, limit=4
    $region2: #{tpu_custom_call.1} parent=1 // loop_pre_header
      _
    $region3: #{tpu_custom_call.1} parent=1 // loop_header
      %s14 = sphi 0, %s18
      %p15 = scmp.ge.s32.totalorder %s14, 4
      %s24 = sphi 0, %s26
      %s27 = sphi 0, %s24
      %s28 = sphi 0, %s27
      %s44 = sphi 0, %s28
      %s48 = sphi 0, %s48
      %s50 = sphi 0, %s48
      %s51 = sphi 0, %s50
      %s65 = sphi 0, %s51
      %s69 = sphi 0, %s69
      %s71 = sphi 0, %s69
      %s72 = sphi 0, %s71
      %s86 = sphi 0, %s72
      %s90 = sphi 0, %s90
      %s92 = sphi 0, %s90
      %s93 = sphi 0, %s92
      %s107 = sphi 0, %s93
      %s111 = sphi 0, %s111
      %s113 = sphi 0, %s111
      %s114 = sphi 0, %s113
      %s128 = sphi 0, %s114
      %s134 = sphi 0, %s136
      %s137 = sphi 0, %s134
      %s138 = sphi 0, %s137
      %s154 = sphi 0, %s138
    $region4: #{tpu_custom_call.1} parent=1 // loop_header_branch
      %17 = sbr.rel (%p15) target = $region8
    $region5: #{tpu_custom_call.1} parent=1 // loop_body
      %s19 = ssub.s32 %s14, 1
      %s20 = ssub.s32 %s14, 2
      %s21 = sadd.s32 %s14, 1
      %s22 = ssub.s32 %s14, %s21
      %p23 = scmp.eq.s32.totalorder %s22, 0
      %s25 = sadd.s32 %s24, 1
      %s26 = scalar_select %p23, %s24, %s25
      %p29 = pneg %p23
      %p30 = scmp.eq.s32.totalorder %s14, 1
      %p31 = por %p29, %p30
      %p32 = scmp.ne.s32.totalorder %s24, %s27
      %p33 = scmp.eq.s32.totalorder %s14, 0
      %p34 = por %p32, %p33
      %p35 = scmp.ne.s32.totalorder %s24, %s27
      %p36 = scmp.eq.s32.totalorder %s19, 1
      %p37 = por %p35, %p36
      %p38 = scmp.ne.s32.totalorder %s27, %s28
      %p39 = scmp.eq.s32.totalorder %s19, 0
      %p40 = por %p38, %p39
      %p41 = scmp.ne.s32.totalorder %s27, %s28
      %p42 = scmp.eq.s32.totalorder %s20, 1
      %p43 = por %p41, %p42
      %p45 = scmp.ne.s32.totalorder %s28, %s44
      %p46 = scmp.eq.s32.totalorder %s20, 0
      %p47 = por %p45, %p46
      %s49 = sadd.s32 %s48, 1
      %p52 = scmp.eq.s32.totalorder %s14, 1
      %p53 = scmp.ne.s32.totalorder %s48, %s50
      %p54 = scmp.eq.s32.totalorder %s14, 0
      %p55 = por %p53, %p54
      %p56 = scmp.ne.s32.totalorder %s48, %s50
      %p57 = scmp.eq.s32.totalorder %s19, 1
      %p58 = por %p56, %p57
      %p59 = scmp.ne.s32.totalorder %s50, %s51
      %p60 = scmp.eq.s32.totalorder %s19, 0
      %p61 = por %p59, %p60
      %p62 = scmp.ne.s32.totalorder %s50, %s51
      %p63 = scmp.eq.s32.totalorder %s20, 1
      %p64 = por %p62, %p63
      %p66 = scmp.ne.s32.totalorder %s51, %s65
      %p67 = scmp.eq.s32.totalorder %s20, 0
      %p68 = por %p66, %p67
      %s70 = sadd.s32 %s69, 1
      %p73 = scmp.eq.s32.totalorder %s14, 1
      %p74 = scmp.ne.s32.totalorder %s69, %s71
      %p75 = scmp.eq.s32.totalorder %s14, 0
      %p76 = por %p74, %p75
      %p77 = scmp.ne.s32.totalorder %s69, %s71
      %p78 = scmp.eq.s32.totalorder %s19, 1
      %p79 = por %p77, %p78
      %p80 = scmp.ne.s32.totalorder %s71, %s72
      %p81 = scmp.eq.s32.totalorder %s19, 0
      %p82 = por %p80, %p81
      %p83 = scmp.ne.s32.totalorder %s71, %s72
      %p84 = scmp.eq.s32.totalorder %s20, 1
      %p85 = por %p83, %p84
      %p87 = scmp.ne.s32.totalorder %s72, %s86
      %p88 = scmp.eq.s32.totalorder %s20, 0
      %p89 = por %p87, %p88
      %s91 = sadd.s32 %s90, 1
      %p94 = scmp.eq.s32.totalorder %s14, 1
      %p95 = scmp.ne.s32.totalorder %s90, %s92
      %p96 = scmp.eq.s32.totalorder %s14, 0
      %p97 = por %p95, %p96
      %p98 = scmp.ne.s32.totalorder %s90, %s92
      %p99 = scmp.eq.s32.totalorder %s19, 1
      %p100 = por %p98, %p99
      %p101 = scmp.ne.s32.totalorder %s92, %s93
      %p102 = scmp.eq.s32.totalorder %s19, 0
      %p103 = por %p101, %p102
      %p104 = scmp.ne.s32.totalorder %s92, %s93
      %p105 = scmp.eq.s32.totalorder %s20, 1
      %p106 = por %p104, %p105
      %p108 = scmp.ne.s32.totalorder %s93, %s107
      %p109 = scmp.eq.s32.totalorder %s20, 0
      %p110 = por %p108, %p109
      %s112 = sadd.s32 %s111, 1
      %p115 = scmp.eq.s32.totalorder %s14, 1
      %p116 = scmp.ne.s32.totalorder %s111, %s113
      %p117 = scmp.eq.s32.totalorder %s14, 0
      %p118 = por %p116, %p117
      %p119 = scmp.ne.s32.totalorder %s111, %s113
      %p120 = scmp.eq.s32.totalorder %s19, 1
      %p121 = por %p119, %p120
      %p122 = scmp.ne.s32.totalorder %s113, %s114
      %p123 = scmp.eq.s32.totalorder %s19, 0
      %p124 = por %p122, %p123
      %p125 = scmp.ne.s32.totalorder %s113, %s114
      %p126 = scmp.eq.s32.totalorder %s20, 1
      %p127 = por %p125, %p126
      %p129 = scmp.ne.s32.totalorder %s114, %s128
      %p130 = scmp.eq.s32.totalorder %s20, 0
      %p131 = por %p129, %p130
      %s132 = ssub.s32 %s14, %s21
      %p133 = scmp.eq.s32.totalorder %s132, 0
      %s135 = sadd.s32 %s134, 1
      %s136 = scalar_select %p133, %s134, %s135
      %p139 = pneg %p133
      %p140 = scmp.eq.s32.totalorder %s14, 1
      %p141 = por %p139, %p140
      %p142 = scmp.ne.s32.totalorder %s134, %s137
      %p143 = scmp.eq.s32.totalorder %s14, 0
      %p144 = por %p142, %p143
      %p145 = scmp.ne.s32.totalorder %s134, %s137
      %p146 = scmp.eq.s32.totalorder %s19, 1
      %p147 = por %p145, %p146
      %p148 = scmp.ne.s32.totalorder %s137, %s138
      %p149 = scmp.eq.s32.totalorder %s19, 0
      %p150 = por %p148, %p149
      %p151 = scmp.ne.s32.totalorder %s137, %s138
      %p152 = scmp.eq.s32.totalorder %s20, 1
      %p153 = por %p151, %p152
      %p155 = scmp.ne.s32.totalorder %s138, %s154
      %p156 = scmp.eq.s32.totalorder %s20, 0
      %p157 = por %p155, %p156
      %p158 = scmp.le.s32.totalorder 1, %s14
      %p159 = scmp.lt.s32.totalorder %s14, 3
      %p160 = pnand %p158, %p159
      %p161 = pneg %p160
      // Predicated region
      $region9: #{tpu_custom_call.1} parent=5 // pred_check
        _
      $region10: #{tpu_custom_call.1} parent=5 // pred_check_branch
        %163 = sbr.rel (%p160) target = $region12
      $region11: #{tpu_custom_call.1} parent=5 // pred_region
        %s164 = ssub.s32 %s14, 1
        // Predicated region
        $region13: #{tpu_custom_call.1} parent=11 // pred_check
          %p165 = pneg %p61
        $region14: #{tpu_custom_call.1} parent=11 // pred_check_branch
          %167 = sbr.rel (%p165) target = $region16
        $region15: #{tpu_custom_call.1} parent=11 // pred_region
          _
        $region16: #{tpu_custom_call.1} parent=11 // pred_fallthru
          _
        // Predicated region
        $region17: #{tpu_custom_call.1} parent=11 // pred_check
          %p168 = pneg %p82
        $region18: #{tpu_custom_call.1} parent=11 // pred_check_branch
          %170 = sbr.rel (%p168) target = $region20
        $region19: #{tpu_custom_call.1} parent=11 // pred_region
          _
        $region20: #{tpu_custom_call.1} parent=11 // pred_fallthru
          _
        // Predicated region
        $region21: #{tpu_custom_call.1} parent=11 // pred_check
          %p171 = pneg %p103
        $region22: #{tpu_custom_call.1} parent=11 // pred_check_branch
          %173 = sbr.rel (%p171) target = $region24
        $region23: #{tpu_custom_call.1} parent=11 // pred_region
          _
        $region24: #{tpu_custom_call.1} parent=11 // pred_fallthru
          _
        // Predicated region
        $region25: #{tpu_custom_call.1} parent=11 // pred_check
          %p174 = pneg %p124
        $region26: #{tpu_custom_call.1} parent=11 // pred_check_branch
          %176 = sbr.rel (%p174) target = $region28
        $region27: #{tpu_custom_call.1} parent=11 // pred_region
          _
        $region28: #{tpu_custom_call.1} parent=11 // pred_fallthru
          _
      $region12: #{tpu_custom_call.1} parent=5 // pred_fallthru
        _
      %p177 = scmp.lt.s32.totalorder %s14, 2
      // Predicated region
      $region29: #{tpu_custom_call.1} parent=5 // pred_check
        %p178 = pneg %p177
      $region30: #{tpu_custom_call.1} parent=5 // pred_check_branch
        %180 = sbr.rel (%p178) target = $region32
      $region31: #{tpu_custom_call.1} parent=5 // pred_region
        // Predicated region
        $region33: #{tpu_custom_call.1} parent=31 // pred_check
          %p181 = pneg %p34
        $region34: #{tpu_custom_call.1} parent=31 // pred_check_branch
          %183 = sbr.rel (%p181) target = $region36
        $region35: #{tpu_custom_call.1} parent=31 // pred_region
          %s184 = smul.u32 32, %s14
          %p185 = scmp.lt.s32.totalorder %s184, 63
          %s186 = scalar_select %p185, %s184, 63
          %s187 = smul.addr %s186, 8
          %s188 = scalar_lea.vmem %s0, %s187
          %s189 = smul.u32 32, %s14
        $region36: #{tpu_custom_call.1} parent=31 // pred_fallthru
          _
      $region32: #{tpu_custom_call.1} parent=5 // pred_fallthru
        _
      %p190 = scmp.le.s32.totalorder 1, %s14
      %p191 = scmp.lt.s32.totalorder %s14, 3
      %p192 = pnand %p190, %p191
      %p193 = pneg %p192
      // Predicated region
      $region37: #{tpu_custom_call.1} parent=5 // pred_check
        _
      $region38: #{tpu_custom_call.1} parent=5 // pred_check_branch
        %195 = sbr.rel (%p192) target = $region40
      $region39: #{tpu_custom_call.1} parent=5 // pred_region
        %s196 = ssub.s32 %s14, 1
        %s197 = smul.u32 32, %s19
        %p198 = scmp.lt.s32.totalorder %s197, 63
        %s199 = scalar_select %p198, %s197, 63
        %s200 = smul.addr %s199, 8
        %s201 = scalar_lea.vmem %s0, %s200
        %p202 = pneg %p40
        %p203 = pneg %p37
        %p204 = pneg %p61
        %p205 = pneg %p58
        %p206 = pneg %p82
        %p207 = pneg %p79
        %p208 = pneg %p103
        %p209 = pneg %p100
        %p210 = pneg %p124
        %p211 = pneg %p121
        %p212 = pneg %p150
        %p213 = pneg %p147
        %s214 = sand.u32 %s137, 1
        %s215 = scalar_lea.sflag [#allocation3], %s214
        %s216 = sand.u32 %s137, 1
        %s217 = smul.addr %s216, 256
        %s218 = scalar_lea.vmem [#allocation2], %s217
        %s219 = smul.u32 32, %s19
        %p220 = scmp.lt.s32.totalorder %s219, 63
        %s221 = scalar_select %p220, %s219, 63
        %s222 = smul.addr %s221, 8
        %s223 = scalar_lea.vmem %s0, %s222
        %s224 = smul.u32 32, %s19
        %s225 = smul.u32 32, %s19
        %v226 = vld [vmem:[%s4] ss:$0 sm:$0xff]
        %s227 = scalar_lea.vmem %s4, 1
        %v228 = vld [vmem:[%s227] ss:$8 sm:$0x3]
        %v229 = vld [vmem:[%s4 + $0x2] ss:$0 sm:$0xff]
        %v230 = vld [vmem:[%s223] sm:$0xff]
        %v231 = vld [vmem:[%s223 + $0x8] sm:$0xff]
        %v232 = vld [vmem:[%s223 + $0x10] sm:$0xff]
        %v233 = vld [vmem:[%s223 + $0x18] sm:$0xff]
        %v234 = vld [vmem:[%s223 + $0x20] sm:$0xff]
        %v235 = vld [vmem:[%s223 + $0x28] sm:$0xff]
        %v236 = vld [vmem:[%s223 + $0x30] sm:$0xff]
        %v237 = vld [vmem:[%s223 + $0x38] sm:$0xff]
        %v238 = vld [vmem:[%s223 + $0x40] sm:$0xff]
        %v239 = vld [vmem:[%s223 + $0x48] sm:$0xff]
        %v240 = vld [vmem:[%s223 + $0x50] sm:$0xff]
        %v241 = vld [vmem:[%s223 + $0x58] sm:$0xff]
        %v242 = vld [vmem:[%s223 + $0x60] sm:$0xff]
        %v243 = vld [vmem:[%s223 + $0x68] sm:$0xff]
        %v244 = vld [vmem:[%s223 + $0x70] sm:$0xff]
        %v245 = vld [vmem:[%s223 + $0x78] sm:$0xff]
        %v246 = vld [vmem:[%s223 + $0x80] sm:$0xff]
        %v247 = vld [vmem:[%s223 + $0x88] sm:$0xff]
        %v248 = vld [vmem:[%s223 + $0x90] sm:$0xff]
        %v249 = vld [vmem:[%s223 + $0x98] sm:$0xff]
        %v250 = vld [vmem:[%s223 + $0xa0] sm:$0xff]
        %v251 = vld [vmem:[%s223 + $0xa8] sm:$0xff]
        %v252 = vld [vmem:[%s223 + $0xb0] sm:$0xff]
        %v253 = vld [vmem:[%s223 + $0xb8] sm:$0xff]
        %v254 = vld [vmem:[%s223 + $0xc0] sm:$0xff]
        %v255 = vld [vmem:[%s223 + $0xc8] sm:$0xff]
        %v256 = vld [vmem:[%s223 + $0xd0] sm:$0xff]
        %v257 = vld [vmem:[%s223 + $0xd8] sm:$0xff]
        %v258 = vld [vmem:[%s223 + $0xe0] sm:$0xff]
        %v259 = vld [vmem:[%s223 + $0xe8] sm:$0xff]
        %v260 = vld [vmem:[%s223 + $0xf0] sm:$0xff]
        %v261 = vld [vmem:[%s223 + $0xf8] sm:$0xff]
        %v262 = vld [vmem:[%s1] sm:$0xff]
        %vm263 = vcmask 64512
        %v265 = vsel %vm263, %v230, 0
        %v268 = vsel %vm263, %v231, 0
        %v271 = vsel %vm263, %v232, 0
        %v274 = vsel %vm263, %v233, 0
        %v277 = vsel %vm263, %v234, 0
        %v280 = vsel %vm263, %v235, 0
        %v283 = vsel %vm263, %v236, 0
        %v286 = vsel %vm263, %v237, 0
        %v289 = vsel %vm263, %v238, 0
        %v292 = vsel %vm263, %v239, 0
        %v295 = vsel %vm263, %v240, 0
        %v298 = vsel %vm263, %v241, 0
        %v301 = vsel %vm263, %v242, 0
        %v304 = vsel %vm263, %v243, 0
        %v307 = vsel %vm263, %v244, 0
        %v310 = vsel %vm263, %v245, 0
        %v313 = vsel %vm263, %v246, 0
        %v316 = vsel %vm263, %v247, 0
        %v319 = vsel %vm263, %v248, 0
        %v322 = vsel %vm263, %v249, 0
        %v325 = vsel %vm263, %v250, 0
        %v328 = vsel %vm263, %v251, 0
        %v331 = vsel %vm263, %v252, 0
        %v334 = vsel %vm263, %v253, 0
        %v337 = vsel %vm263, %v254, 0
        %v340 = vsel %vm263, %v255, 0
        %v343 = vsel %vm263, %v256, 0
        %v346 = vsel %vm263, %v257, 0
        %v349 = vsel %vm263, %v258, 0
        %v352 = vsel %vm263, %v259, 0
        %v355 = vsel %vm263, %v260, 0
        %v358 = vsel %vm263, %v261, 0
        %360 = vmatprep.subr.mxu0 0.0
        %361 = vmatpush1.msra.mxu0 %v262
        %362 = vmatprep.subr.mxu0 0.0
        %363 = vmatpush1.msra.mxu0 0.0
        %364 = vmatprep.subr.mxu0 0.0
        %365 = vmatpush1.msra.mxu0 0.0
        %366 = vmatprep.subr.mxu0 0.0
        %367 = vmatpush1.msra.mxu0 0.0
        %368 = vmatprep.subr.mxu0 0.0
        %369 = vmatpush1.msra.mxu0 0.0
        %370 = vmatprep.subr.mxu0 0.0
        %371 = vmatpush1.msra.mxu0 0.0
        %372 = vmatprep.subr.mxu0 0.0
        %373 = vmatpush1.msra.mxu0 0.0
        %374 = vmatprep.subr.mxu0 0.0
        %375 = vmatpush1.msra.mxu0 0.0
        %376 = vmatprep.subr.mxu0 0.0
        %377 = vmatpush1.msra.mxu0 0.0
        %378 = vmatprep.subr.mxu0 0.0
        %379 = vmatpush1.msra.mxu0 0.0
        %380 = vmatprep.subr.mxu0 0.0
        %381 = vmatpush1.msra.mxu0 0.0
        %382 = vmatprep.subr.mxu0 0.0
        %383 = vmatpush1.msra.mxu0 0.0
        %384 = vmatprep.subr.mxu0 0.0
        %385 = vmatpush1.msra.mxu0 0.0
        %386 = vmatprep.subr.mxu0 0.0
        %387 = vmatpush1.msra.mxu0 0.0
        %388 = vmatprep.subr.mxu0 0.0
        %389 = vmatpush1.msra.mxu0 0.0
        %390 = vmatprep.subr.mxu0 0.0
        %391 = vmatpush1.msra.mxu0 0.0
        %392 = vmatprep.subr.mxu0 0.0
        %393 = vmatpush1.msra.mxu0 0.0
        %394 = vmatprep.subr.mxu0 0.0
        %395 = vmatpush1.msra.mxu0 0.0
        %396 = vmatprep.subr.mxu0 0.0
        %397 = vmatpush1.msra.mxu0 0.0
        %398 = vmatprep.subr.mxu0 0.0
        %399 = vmatpush1.msra.mxu0 0.0
        %400 = vmatprep.subr.mxu0 0.0
        %401 = vmatpush1.msra.mxu0 0.0
        %402 = vmatprep.subr.mxu0 0.0
        %403 = vmatpush1.msra.mxu0 0.0
        %404 = vmatprep.subr.mxu0 0.0
        %405 = vmatpush1.msra.mxu0 0.0
        %406 = vmatprep.subr.mxu0 0.0
        %407 = vmatpush1.msra.mxu0 0.0
        %408 = vmatprep.subr.mxu0 0.0
        %409 = vmatpush1.msra.mxu0 0.0
        %410 = vmatprep.subr.mxu0 0.0
        %411 = vmatpush1.msra.mxu0 0.0
        %412 = vmatprep.subr.mxu0 0.0
        %413 = vmatpush1.msra.mxu0 0.0
        %414 = vmatprep.subr.mxu0 0.0
        %415 = vmatpush1.msra.mxu0 0.0
        %416 = vmatprep.subr.mxu0 0.0
        %417 = vmatpush1.msra.mxu0 0.0
        %418 = vmatprep.subr.mxu0 0.0
        %419 = vmatpush1.msra.mxu0 0.0
        %420 = vmatprep.subr.mxu0 0.0
        %421 = vmatpush1.msra.mxu0 0.0
        %422 = vmatprep.subr.mxu0 0.0
        %423 = vmatpush1.msra.mxu0 0.0
        %424 = vmatprep.mubr.f32.mxu0 0.0
        %425 = vmatmul.mubr.f32.gmra.mrb[0].mxu0 %v265
        %v426 = vpop.f32.mrb[0].mxu0
        %v427 = vadd.f32 %v226, %v426
        %v428 = vpop.f32.mrb[0].mxu0
        %429 = vmatprep.mubr.f32.mxu0 0.0
        %430 = vmatmul.mubr.f32.gmra.mrb[0].mxu0 %v268
        %v431 = vpop.f32.mrb[0].mxu0
        %v432 = vadd.f32 %v226, %v431
        %v433 = vpop.f32.mrb[0].mxu0
        %434 = vmatprep.mubr.f32.mxu0 0.0
        %435 = vmatmul.mubr.f32.gmra.mrb[0].mxu0 %v271
        %v436 = vpop.f32.mrb[0].mxu0
        %v437 = vadd.f32 %v226, %v436
        %v438 = vpop.f32.mrb[0].mxu0
        %439 = vmatprep.mubr.f32.mxu0 0.0
        %440 = vmatmul.mubr.f32.gmra.mrb[0].mxu0 %v274
        %v441 = vpop.f32.mrb[0].mxu0
        %v442 = vadd.f32 %v226, %v441
        %v443 = vpop.f32.mrb[0].mxu0
        %444 = vmatprep.mubr.f32.mxu0 0.0
        %445 = vmatmul.mubr.f32.gmra.mrb[0].mxu0 %v277
        %v446 = vpop.f32.mrb[0].mxu0
        %v447 = vadd.f32 %v226, %v446
        %v448 = vpop.f32.mrb[0].mxu0
        %449 = vmatprep.mubr.f32.mxu0 0.0
        %450 = vmatmul.mubr.f32.gmra.mrb[0].mxu0 %v280
        %v451 = vpop.f32.mrb[0].mxu0
        %v452 = vadd.f32 %v226, %v451
        %v453 = vpop.f32.mrb[0].mxu0
        %454 = vmatprep.mubr.f32.mxu0 0.0
        %455 = vmatmul.mubr.f32.gmra.mrb[0].mxu0 %v283
        %v456 = vpop.f32.mrb[0].mxu0
        %v457 = vadd.f32 %v226, %v456
        %v458 = vpop.f32.mrb[0].mxu0
        %459 = vmatprep.mubr.f32.mxu0 0.0
        %460 = vmatmul.mubr.f32.gmra.mrb[0].mxu0 %v286
        %v461 = vpop.f32.mrb[0].mxu0
        %v462 = vadd.f32 %v226, %v461
        %v463 = vpop.f32.mrb[0].mxu0
        %464 = vmatprep.mubr.f32.mxu0 0.0
        %465 = vmatmul.mubr.f32.gmra.mrb[0].mxu0 %v289
        %v466 = vpop.f32.mrb[0].mxu0
        %v467 = vadd.f32 %v226, %v466
        %v468 = vpop.f32.mrb[0].mxu0
        %469 = vmatprep.mubr.f32.mxu0 0.0
        %470 = vmatmul.mubr.f32.gmra.mrb[0].mxu0 %v292
        %v471 = vpop.f32.mrb[0].mxu0
        %v472 = vadd.f32 %v226, %v471
        %v473 = vpop.f32.mrb[0].mxu0
        %474 = vmatprep.mubr.f32.mxu0 0.0
        %475 = vmatmul.mubr.f32.gmra.mrb[0].mxu0 %v295
        %v476 = vpop.f32.mrb[0].mxu0
        %v477 = vadd.f32 %v226, %v476
        %v478 = vpop.f32.mrb[0].mxu0
        %479 = vmatprep.mubr.f32.mxu0 0.0
        %480 = vmatmul.mubr.f32.gmra.mrb[0].mxu0 %v298
        %v481 = vpop.f32.mrb[0].mxu0
        %v482 = vadd.f32 %v226, %v481
        %v483 = vpop.f32.mrb[0].mxu0
        %484 = vmatprep.mubr.f32.mxu0 0.0
        %485 = vmatmul.mubr.f32.gmra.mrb[0].mxu0 %v301
        %v486 = vpop.f32.mrb[0].mxu0
        %v487 = vadd.f32 %v226, %v486
        %v488 = vpop.f32.mrb[0].mxu0
        %489 = vmatprep.mubr.f32.mxu0 0.0
        %490 = vmatmul.mubr.f32.gmra.mrb[0].mxu0 %v304
        %v491 = vpop.f32.mrb[0].mxu0
        %v492 = vadd.f32 %v226, %v491
        %v493 = vpop.f32.mrb[0].mxu0
        %494 = vmatprep.mubr.f32.mxu0 0.0
        %495 = vmatmul.mubr.f32.gmra.mrb[0].mxu0 %v307
        %v496 = vpop.f32.mrb[0].mxu0
        %v497 = vadd.f32 %v226, %v496
        %v498 = vpop.f32.mrb[0].mxu0
        %499 = vmatprep.mubr.f32.mxu0 0.0
        %500 = vmatmul.mubr.f32.gmra.mrb[0].mxu0 %v310
        %v501 = vpop.f32.mrb[0].mxu0
        %v502 = vadd.f32 %v226, %v501
        %v503 = vpop.f32.mrb[0].mxu0
        %504 = vmatprep.mubr.f32.mxu0 0.0
        %505 = vmatmul.mubr.f32.gmra.mrb[0].mxu0 %v313
        %v506 = vpop.f32.mrb[0].mxu0
        %v507 = vadd.f32 %v226, %v506
        %v508 = vpop.f32.mrb[0].mxu0
        %509 = vmatprep.mubr.f32.mxu0 0.0
        %510 = vmatmul.mubr.f32.gmra.mrb[0].mxu0 %v316
        %v511 = vpop.f32.mrb[0].mxu0
        %v512 = vadd.f32 %v226, %v511
        %v513 = vpop.f32.mrb[0].mxu0
        %514 = vmatprep.mubr.f32.mxu0 0.0
        %515 = vmatmul.mubr.f32.gmra.mrb[0].mxu0 %v319
        %v516 = vpop.f32.mrb[0].mxu0
        %v517 = vadd.f32 %v226, %v516
        %v518 = vpop.f32.mrb[0].mxu0
        %519 = vmatprep.mubr.f32.mxu0 0.0
        %520 = vmatmul.mubr.f32.gmra.mrb[0].mxu0 %v322
        %v521 = vpop.f32.mrb[0].mxu0
        %v522 = vadd.f32 %v226, %v521
        %v523 = vpop.f32.mrb[0].mxu0
        %524 = vmatprep.mubr.f32.mxu0 0.0
        %525 = vmatmul.mubr.f32.gmra.mrb[0].mxu0 %v325
        %v526 = vpop.f32.mrb[0].mxu0
        %v527 = vadd.f32 %v226, %v526
        %v528 = vpop.f32.mrb[0].mxu0
        %529 = vmatprep.mubr.f32.mxu0 0.0
        %530 = vmatmul.mubr.f32.gmra.mrb[0].mxu0 %v328
        %v531 = vpop.f32.mrb[0].mxu0
        %v532 = vadd.f32 %v226, %v531
        %v533 = vpop.f32.mrb[0].mxu0
        %534 = vmatprep.mubr.f32.mxu0 0.0
        %535 = vmatmul.mubr.f32.gmra.mrb[0].mxu0 %v331
        %v536 = vpop.f32.mrb[0].mxu0
        %v537 = vadd.f32 %v226, %v536
        %v538 = vpop.f32.mrb[0].mxu0
        %539 = vmatprep.mubr.f32.mxu0 0.0
        %540 = vmatmul.mubr.f32.gmra.mrb[0].mxu0 %v334
        %v541 = vpop.f32.mrb[0].mxu0
        %v542 = vadd.f32 %v226, %v541
        %v543 = vpop.f32.mrb[0].mxu0
        %544 = vmatprep.mubr.f32.mxu0 0.0
        %545 = vmatmul.mubr.f32.gmra.mrb[0].mxu0 %v337
        %v546 = vpop.f32.mrb[0].mxu0
        %v547 = vadd.f32 %v226, %v546
        %v548 = vpop.f32.mrb[0].mxu0
        %549 = vmatprep.mubr.f32.mxu0 0.0
        %550 = vmatmul.mubr.f32.gmra.mrb[0].mxu0 %v340
        %v551 = vpop.f32.mrb[0].mxu0
        %v552 = vadd.f32 %v226, %v551
        %v553 = vpop.f32.mrb[0].mxu0
        %554 = vmatprep.mubr.f32.mxu0 0.0
        %555 = vmatmul.mubr.f32.gmra.mrb[0].mxu0 %v343
        %v556 = vpop.f32.mrb[0].mxu0
        %v557 = vadd.f32 %v226, %v556
        %v558 = vpop.f32.mrb[0].mxu0
        %559 = vmatprep.mubr.f32.mxu0 0.0
        %560 = vmatmul.mubr.f32.gmra.mrb[0].mxu0 %v346
        %v561 = vpop.f32.mrb[0].mxu0
        %v562 = vadd.f32 %v226, %v561
        %v563 = vpop.f32.mrb[0].mxu0
        %564 = vmatprep.mubr.f32.mxu0 0.0
        %565 = vmatmul.mubr.f32.gmra.mrb[0].mxu0 %v349
        %v566 = vpop.f32.mrb[0].mxu0
        %v567 = vadd.f32 %v226, %v566
        %v568 = vpop.f32.mrb[0].mxu0
        %569 = vmatprep.mubr.f32.mxu0 0.0
        %570 = vmatmul.mubr.f32.gmra.mrb[0].mxu0 %v352
        %v571 = vpop.f32.mrb[0].mxu0
        %v572 = vadd.f32 %v226, %v571
        %v573 = vpop.f32.mrb[0].mxu0
        %574 = vmatprep.mubr.f32.mxu0 0.0
        %575 = vmatmul.mubr.f32.gmra.mrb[0].mxu0 %v355
        %v576 = vpop.f32.mrb[0].mxu0
        %v577 = vadd.f32 %v226, %v576
        %v578 = vpop.f32.mrb[0].mxu0
        %579 = vmatprep.mubr.f32.mxu0 0.0
        %580 = vmatmul.mubr.f32.gmra.mrb[0].mxu0 %v358
        %v581 = vpop.f32.mrb[0].mxu0
        %v582 = vadd.f32 %v226, %v581
        %v583 = vpop.f32.mrb[0].mxu0
        %584 = vdwg.mxu0
        %v585 = vmax.f32 %v427, 0.0
        %v586 = vmax.f32 %v432, 0.0
        %v587 = vmax.f32 %v437, 0.0
        %v588 = vmax.f32 %v442, 0.0
        %v589 = vmax.f32 %v447, 0.0
        %v590 = vmax.f32 %v452, 0.0
        %v591 = vmax.f32 %v457, 0.0
        %v592 = vmax.f32 %v462, 0.0
        %v593 = vmax.f32 %v467, 0.0
        %v594 = vmax.f32 %v472, 0.0
        %v595 = vmax.f32 %v477, 0.0
        %v596 = vmax.f32 %v482, 0.0
        %v597 = vmax.f32 %v487, 0.0
        %v598 = vmax.f32 %v492, 0.0
        %v599 = vmax.f32 %v497, 0.0
        %v600 = vmax.f32 %v502, 0.0
        %v601 = vmax.f32 %v507, 0.0
        %v602 = vmax.f32 %v512, 0.0
        %v603 = vmax.f32 %v517, 0.0
        %v604 = vmax.f32 %v522, 0.0
        %v605 = vmax.f32 %v527, 0.0
        %v606 = vmax.f32 %v532, 0.0
        %v607 = vmax.f32 %v537, 0.0
        %v608 = vmax.f32 %v542, 0.0
        %v609 = vmax.f32 %v547, 0.0
        %v610 = vmax.f32 %v552, 0.0
        %v611 = vmax.f32 %v557, 0.0
        %v612 = vmax.f32 %v562, 0.0
        %v613 = vmax.f32 %v567, 0.0
        %v614 = vmax.f32 %v572, 0.0
        %v615 = vmax.f32 %v577, 0.0
        %v616 = vmax.f32 %v582, 0.0
        %v617 = vld [vmem:[%s2] sm:$0xff]
        %v618 = vld [vmem:[%s2 + $0x8] sm:$0xff]
        %v619 = vld [vmem:[%s2 + $0x10] sm:$0xff]
        %v620 = vld [vmem:[%s2 + $0x18] sm:$0xff]
        %v621 = vld [vmem:[%s2 + $0x20] sm:$0xff]
        %v622 = vld [vmem:[%s2 + $0x28] sm:$0xff]
        %v623 = vld [vmem:[%s2 + $0x30] sm:$0xff]
        %v624 = vld [vmem:[%s2 + $0x38] sm:$0xff]
        %v625 = vld [vmem:[%s2 + $0x40] sm:$0xff]
        %v626 = vld [vmem:[%s2 + $0x48] sm:$0xff]
        %v627 = vld [vmem:[%s2 + $0x50] sm:$0xff]
        %v628 = vld [vmem:[%s2 + $0x58] sm:$0xff]
        %v629 = vld [vmem:[%s2 + $0x60] sm:$0xff]
        %v630 = vld [vmem:[%s2 + $0x68] sm:$0xff]
        %v631 = vld [vmem:[%s2 + $0x70] sm:$0xff]
        %v632 = vld [vmem:[%s2 + $0x78] sm:$0xff]
        %v633 = vld [vmem:[%s2 + $0x80] sm:$0xff]
        %v634 = vld [vmem:[%s2 + $0x88] sm:$0xff]
        %v635 = vld [vmem:[%s2 + $0x90] sm:$0xff]
        %v636 = vld [vmem:[%s2 + $0x98] sm:$0xff]
        %v637 = vld [vmem:[%s2 + $0xa0] sm:$0xff]
        %v638 = vld [vmem:[%s2 + $0xa8] sm:$0xff]
        %v639 = vld [vmem:[%s2 + $0xb0] sm:$0xff]
        %v640 = vld [vmem:[%s2 + $0xb8] sm:$0xff]
        %v641 = vld [vmem:[%s2 + $0xc0] sm:$0xff]
        %v642 = vld [vmem:[%s2 + $0xc8] sm:$0xff]
        %v643 = vld [vmem:[%s2 + $0xd0] sm:$0xff]
        %v644 = vld [vmem:[%s2 + $0xd8] sm:$0xff]
        %v645 = vld [vmem:[%s2 + $0xe0] sm:$0xff]
        %v646 = vld [vmem:[%s2 + $0xe8] sm:$0xff]
        %v647 = vld [vmem:[%s2 + $0xf0] sm:$0xff]
        %v648 = vld [vmem:[%s2 + $0xf8] sm:$0xff]
        %v650 = vlaneseq
        %v651 = vshrl.u32 %v650, 7
        %v652 = vsub.s32 0, %v651
        %v653 = vrot.slane %v228, %v652
        %v654 = vlaneseq
        %v655 = vshrl.u32 %v654, 7
        %v656 = vsub.s32 1, %v655
        %v657 = vrot.slane %v228, %v656
        %660 = vmatprep.subr.mxu0 %v618
        %661 = vmatpush1.msra.mxu0 %v617
        %662 = vmatprep.subr.mxu0 %v620
        %663 = vmatpush1.msra.mxu0 %v619
        %664 = vmatprep.subr.mxu0 %v622
        %665 = vmatpush1.msra.mxu0 %v621
        %666 = vmatprep.subr.mxu0 %v624
        %667 = vmatpush1.msra.mxu0 %v623
        %668 = vmatprep.subr.mxu0 %v626
        %669 = vmatpush1.msra.mxu0 %v625
        %670 = vmatprep.subr.mxu0 %v628
        %671 = vmatpush1.msra.mxu0 %v627
        %672 = vmatprep.subr.mxu0 %v630
        %673 = vmatpush1.msra.mxu0 %v629
        %674 = vmatprep.subr.mxu0 %v632
        %675 = vmatpush1.msra.mxu0 %v631
        %676 = vmatprep.subr.mxu0 %v634
        %677 = vmatpush1.msra.mxu0 %v633
        %678 = vmatprep.subr.mxu0 %v636
        %679 = vmatpush1.msra.mxu0 %v635
        %680 = vmatprep.subr.mxu0 %v638
        %681 = vmatpush1.msra.mxu0 %v637
        %682 = vmatprep.subr.mxu0 %v640
        %683 = vmatpush1.msra.mxu0 %v639
        %684 = vmatprep.subr.mxu0 %v642
        %685 = vmatpush1.msra.mxu0 %v641
        %686 = vmatprep.subr.mxu0 %v644
        %687 = vmatpush1.msra.mxu0 %v643
        %688 = vmatprep.subr.mxu0 %v646
        %689 = vmatpush1.msra.mxu0 %v645
        %690 = vmatprep.subr.mxu0 %v648
        %691 = vmatpush1.msra.mxu0 %v647
        %692 = vmatprep.subr.mxu0 0.0
        %693 = vmatpush1.msra.mxu0 0.0
        %694 = vmatprep.subr.mxu0 0.0
        %695 = vmatpush1.msra.mxu0 0.0
        %696 = vmatprep.subr.mxu0 0.0
        %697 = vmatpush1.msra.mxu0 0.0
        %698 = vmatprep.subr.mxu0 0.0
        %699 = vmatpush1.msra.mxu0 0.0
        %700 = vmatprep.subr.mxu0 0.0
        %701 = vmatpush1.msra.mxu0 0.0
        %702 = vmatprep.subr.mxu0 0.0
        %703 = vmatpush1.msra.mxu0 0.0
        %704 = vmatprep.subr.mxu0 0.0
        %705 = vmatpush1.msra.mxu0 0.0
        %706 = vmatprep.subr.mxu0 0.0
        %707 = vmatpush1.msra.mxu0 0.0
        %708 = vmatprep.subr.mxu0 0.0
        %709 = vmatpush1.msra.mxu0 0.0
        %710 = vmatprep.subr.mxu0 0.0
        %711 = vmatpush1.msra.mxu0 0.0
        %712 = vmatprep.subr.mxu0 0.0
        %713 = vmatpush1.msra.mxu0 0.0
        %714 = vmatprep.subr.mxu0 0.0
        %715 = vmatpush1.msra.mxu0 0.0
        %716 = vmatprep.subr.mxu0 0.0
        %717 = vmatpush1.msra.mxu0 0.0
        %718 = vmatprep.subr.mxu0 0.0
        %719 = vmatpush1.msra.mxu0 0.0
        %720 = vmatprep.subr.mxu0 0.0
        %721 = vmatpush1.msra.mxu0 0.0
        %722 = vmatprep.subr.mxu0 0.0
        %723 = vmatpush1.msra.mxu0 0.0
        %724 = vmatprep.mubr.f32.mxu0 0.0
        %725 = vmatmul.mubr.f32.gmra.mrb[0].mxu0 %v585
        %v726 = vpop.f32.mrb[0].mxu0
        %v727 = vadd.f32 %v653, %v726
        %v728 = vpop.f32.mrb[0].mxu0
        %v729 = vadd.f32 %v657, %v728
        %730 = vmatprep.mubr.f32.mxu0 0.0
        %731 = vmatmul.mubr.f32.gmra.mrb[0].mxu0 %v586
        %v732 = vpop.f32.mrb[0].mxu0
        %v733 = vadd.f32 %v653, %v732
        %v734 = vpop.f32.mrb[0].mxu0
        %v735 = vadd.f32 %v657, %v734
        %736 = vmatprep.mubr.f32.mxu0 0.0
        %737 = vmatmul.mubr.f32.gmra.mrb[0].mxu0 %v587
        %v738 = vpop.f32.mrb[0].mxu0
        %v739 = vadd.f32 %v653, %v738
        %v740 = vpop.f32.mrb[0].mxu0
        %v741 = vadd.f32 %v657, %v740
        %742 = vmatprep.mubr.f32.mxu0 0.0
        %743 = vmatmul.mubr.f32.gmra.mrb[0].mxu0 %v588
        %v744 = vpop.f32.mrb[0].mxu0
        %v745 = vadd.f32 %v653, %v744
        %v746 = vpop.f32.mrb[0].mxu0
        %v747 = vadd.f32 %v657, %v746
        %748 = vmatprep.mubr.f32.mxu0 0.0
        %749 = vmatmul.mubr.f32.gmra.mrb[0].mxu0 %v589
        %v750 = vpop.f32.mrb[0].mxu0
        %v751 = vadd.f32 %v653, %v750
        %v752 = vpop.f32.mrb[0].mxu0
        %v753 = vadd.f32 %v657, %v752
        %754 = vmatprep.mubr.f32.mxu0 0.0
        %755 = vmatmul.mubr.f32.gmra.mrb[0].mxu0 %v590
        %v756 = vpop.f32.mrb[0].mxu0
        %v757 = vadd.f32 %v653, %v756
        %v758 = vpop.f32.mrb[0].mxu0
        %v759 = vadd.f32 %v657, %v758
        %760 = vmatprep.mubr.f32.mxu0 0.0
        %761 = vmatmul.mubr.f32.gmra.mrb[0].mxu0 %v591
        %v762 = vpop.f32.mrb[0].mxu0
        %v763 = vadd.f32 %v653, %v762
        %v764 = vpop.f32.mrb[0].mxu0
        %v765 = vadd.f32 %v657, %v764
        %766 = vmatprep.mubr.f32.mxu0 0.0
        %767 = vmatmul.mubr.f32.gmra.mrb[0].mxu0 %v592
        %v768 = vpop.f32.mrb[0].mxu0
        %v769 = vadd.f32 %v653, %v768
        %v770 = vpop.f32.mrb[0].mxu0
        %v771 = vadd.f32 %v657, %v770
        %772 = vmatprep.mubr.f32.mxu0 0.0
        %773 = vmatmul.mubr.f32.gmra.mrb[0].mxu0 %v593
        %v774 = vpop.f32.mrb[0].mxu0
        %v775 = vadd.f32 %v653, %v774
        %v776 = vpop.f32.mrb[0].mxu0
        %v777 = vadd.f32 %v657, %v776
        %778 = vmatprep.mubr.f32.mxu0 0.0
        %779 = vmatmul.mubr.f32.gmra.mrb[0].mxu0 %v594
        %v780 = vpop.f32.mrb[0].mxu0
        %v781 = vadd.f32 %v653, %v780
        %v782 = vpop.f32.mrb[0].mxu0
        %v783 = vadd.f32 %v657, %v782
        %784 = vmatprep.mubr.f32.mxu0 0.0
        %785 = vmatmul.mubr.f32.gmra.mrb[0].mxu0 %v595
        %v786 = vpop.f32.mrb[0].mxu0
        %v787 = vadd.f32 %v653, %v786
        %v788 = vpop.f32.mrb[0].mxu0
        %v789 = vadd.f32 %v657, %v788
        %790 = vmatprep.mubr.f32.mxu0 0.0
        %791 = vmatmul.mubr.f32.gmra.mrb[0].mxu0 %v596
        %v792 = vpop.f32.mrb[0].mxu0
        %v793 = vadd.f32 %v653, %v792
        %v794 = vpop.f32.mrb[0].mxu0
        %v795 = vadd.f32 %v657, %v794
        %796 = vmatprep.mubr.f32.mxu0 0.0
        %797 = vmatmul.mubr.f32.gmra.mrb[0].mxu0 %v597
        %v798 = vpop.f32.mrb[0].mxu0
        %v799 = vadd.f32 %v653, %v798
        %v800 = vpop.f32.mrb[0].mxu0
        %v801 = vadd.f32 %v657, %v800
        %802 = vmatprep.mubr.f32.mxu0 0.0
        %803 = vmatmul.mubr.f32.gmra.mrb[0].mxu0 %v598
        %v804 = vpop.f32.mrb[0].mxu0
        %v805 = vadd.f32 %v653, %v804
        %v806 = vpop.f32.mrb[0].mxu0
        %v807 = vadd.f32 %v657, %v806
        %808 = vmatprep.mubr.f32.mxu0 0.0
        %809 = vmatmul.mubr.f32.gmra.mrb[0].mxu0 %v599
        %v810 = vpop.f32.mrb[0].mxu0
        %v811 = vadd.f32 %v653, %v810
        %v812 = vpop.f32.mrb[0].mxu0
        %v813 = vadd.f32 %v657, %v812
        %814 = vmatprep.mubr.f32.mxu0 0.0
        %815 = vmatmul.mubr.f32.gmra.mrb[0].mxu0 %v600
        %v816 = vpop.f32.mrb[0].mxu0
        %v817 = vadd.f32 %v653, %v816
        %v818 = vpop.f32.mrb[0].mxu0
        %v819 = vadd.f32 %v657, %v818
        %820 = vmatprep.mubr.f32.mxu0 0.0
        %821 = vmatmul.mubr.f32.gmra.mrb[0].mxu0 %v601
        %v822 = vpop.f32.mrb[0].mxu0
        %v823 = vadd.f32 %v653, %v822
        %v824 = vpop.f32.mrb[0].mxu0
        %v825 = vadd.f32 %v657, %v824
        %826 = vmatprep.mubr.f32.mxu0 0.0
        %827 = vmatmul.mubr.f32.gmra.mrb[0].mxu0 %v602
        %v828 = vpop.f32.mrb[0].mxu0
        %v829 = vadd.f32 %v653, %v828
        %v830 = vpop.f32.mrb[0].mxu0
        %v831 = vadd.f32 %v657, %v830
        %832 = vmatprep.mubr.f32.mxu0 0.0
        %833 = vmatmul.mubr.f32.gmra.mrb[0].mxu0 %v603
        %v834 = vpop.f32.mrb[0].mxu0
        %v835 = vadd.f32 %v653, %v834
        %v836 = vpop.f32.mrb[0].mxu0
        %v837 = vadd.f32 %v657, %v836
        %838 = vmatprep.mubr.f32.mxu0 0.0
        %839 = vmatmul.mubr.f32.gmra.mrb[0].mxu0 %v604
        %v840 = vpop.f32.mrb[0].mxu0
        %v841 = vadd.f32 %v653, %v840
        %v842 = vpop.f32.mrb[0].mxu0
        %v843 = vadd.f32 %v657, %v842
        %844 = vmatprep.mubr.f32.mxu0 0.0
        %845 = vmatmul.mubr.f32.gmra.mrb[0].mxu0 %v605
        %v846 = vpop.f32.mrb[0].mxu0
        %v847 = vadd.f32 %v653, %v846
        %v848 = vpop.f32.mrb[0].mxu0
        %v849 = vadd.f32 %v657, %v848
        %850 = vmatprep.mubr.f32.mxu0 0.0
        %851 = vmatmul.mubr.f32.gmra.mrb[0].mxu0 %v606
        %v852 = vpop.f32.mrb[0].mxu0
        %v853 = vadd.f32 %v653, %v852
        %v854 = vpop.f32.mrb[0].mxu0
        %v855 = vadd.f32 %v657, %v854
        %856 = vmatprep.mubr.f32.mxu0 0.0
        %857 = vmatmul.mubr.f32.gmra.mrb[0].mxu0 %v607
        %v858 = vpop.f32.mrb[0].mxu0
        %v859 = vadd.f32 %v653, %v858
        %v860 = vpop.f32.mrb[0].mxu0
        %v861 = vadd.f32 %v657, %v860
        %862 = vmatprep.mubr.f32.mxu0 0.0
        %863 = vmatmul.mubr.f32.gmra.mrb[0].mxu0 %v608
        %v864 = vpop.f32.mrb[0].mxu0
        %v865 = vadd.f32 %v653, %v864
        %v866 = vpop.f32.mrb[0].mxu0
        %v867 = vadd.f32 %v657, %v866
        %868 = vmatprep.mubr.f32.mxu0 0.0
        %869 = vmatmul.mubr.f32.gmra.mrb[0].mxu0 %v609
        %v870 = vpop.f32.mrb[0].mxu0
        %v871 = vadd.f32 %v653, %v870
        %v872 = vpop.f32.mrb[0].mxu0
        %v873 = vadd.f32 %v657, %v872
        %874 = vmatprep.mubr.f32.mxu0 0.0
        %875 = vmatmul.mubr.f32.gmra.mrb[0].mxu0 %v610
        %v876 = vpop.f32.mrb[0].mxu0
        %v877 = vadd.f32 %v653, %v876
        %v878 = vpop.f32.mrb[0].mxu0
        %v879 = vadd.f32 %v657, %v878
        %880 = vmatprep.mubr.f32.mxu0 0.0
        %881 = vmatmul.mubr.f32.gmra.mrb[0].mxu0 %v611
        %v882 = vpop.f32.mrb[0].mxu0
        %v883 = vadd.f32 %v653, %v882
        %v884 = vpop.f32.mrb[0].mxu0
        %v885 = vadd.f32 %v657, %v884
        %886 = vmatprep.mubr.f32.mxu0 0.0
        %887 = vmatmul.mubr.f32.gmra.mrb[0].mxu0 %v612
        %v888 = vpop.f32.mrb[0].mxu0
        %v889 = vadd.f32 %v653, %v888
        %v890 = vpop.f32.mrb[0].mxu0
        %v891 = vadd.f32 %v657, %v890
        %892 = vmatprep.mubr.f32.mxu0 0.0
        %893 = vmatmul.mubr.f32.gmra.mrb[0].mxu0 %v613
        %v894 = vpop.f32.mrb[0].mxu0
        %v895 = vadd.f32 %v653, %v894
        %v896 = vpop.f32.mrb[0].mxu0
        %v897 = vadd.f32 %v657, %v896
        %898 = vmatprep.mubr.f32.mxu0 0.0
        %899 = vmatmul.mubr.f32.gmra.mrb[0].mxu0 %v614
        %v900 = vpop.f32.mrb[0].mxu0
        %v901 = vadd.f32 %v653, %v900
        %v902 = vpop.f32.mrb[0].mxu0
        %v903 = vadd.f32 %v657, %v902
        %904 = vmatprep.mubr.f32.mxu0 0.0
        %905 = vmatmul.mubr.f32.gmra.mrb[0].mxu0 %v615
        %v906 = vpop.f32.mrb[0].mxu0
        %v907 = vadd.f32 %v653, %v906
        %v908 = vpop.f32.mrb[0].mxu0
        %v909 = vadd.f32 %v657, %v908
        %910 = vmatprep.mubr.f32.mxu0 0.0
        %911 = vmatmul.mubr.f32.gmra.mrb[0].mxu0 %v616
        %v912 = vpop.f32.mrb[0].mxu0
        %v913 = vadd.f32 %v653, %v912
        %v914 = vpop.f32.mrb[0].mxu0
        %v915 = vadd.f32 %v657, %v914
        %916 = vdwg.mxu0
        %v917 = vmax.f32 %v727, 0.0
        %v918 = vmax.f32 %v729, 0.0
        %v919 = vmax.f32 %v733, 0.0
        %v920 = vmax.f32 %v735, 0.0
        %v921 = vmax.f32 %v739, 0.0
        %v922 = vmax.f32 %v741, 0.0
        %v923 = vmax.f32 %v745, 0.0
        %v924 = vmax.f32 %v747, 0.0
        %v925 = vmax.f32 %v751, 0.0
        %v926 = vmax.f32 %v753, 0.0
        %v927 = vmax.f32 %v757, 0.0
        %v928 = vmax.f32 %v759, 0.0
        %v929 = vmax.f32 %v763, 0.0
        %v930 = vmax.f32 %v765, 0.0
        %v931 = vmax.f32 %v769, 0.0
        %v932 = vmax.f32 %v771, 0.0
        %v933 = vmax.f32 %v775, 0.0
        %v934 = vmax.f32 %v777, 0.0
        %v935 = vmax.f32 %v781, 0.0
        %v936 = vmax.f32 %v783, 0.0
        %v937 = vmax.f32 %v787, 0.0
        %v938 = vmax.f32 %v789, 0.0
        %v939 = vmax.f32 %v793, 0.0
        %v940 = vmax.f32 %v795, 0.0
        %v941 = vmax.f32 %v799, 0.0
        %v942 = vmax.f32 %v801, 0.0
        %v943 = vmax.f32 %v805, 0.0
        %v944 = vmax.f32 %v807, 0.0
        %v945 = vmax.f32 %v811, 0.0
        %v946 = vmax.f32 %v813, 0.0
        %v947 = vmax.f32 %v817, 0.0
        %v948 = vmax.f32 %v819, 0.0
        %v949 = vmax.f32 %v823, 0.0
        %v950 = vmax.f32 %v825, 0.0
        %v951 = vmax.f32 %v829, 0.0
        %v952 = vmax.f32 %v831, 0.0
        %v953 = vmax.f32 %v835, 0.0
        %v954 = vmax.f32 %v837, 0.0
        %v955 = vmax.f32 %v841, 0.0
        %v956 = vmax.f32 %v843, 0.0
        %v957 = vmax.f32 %v847, 0.0
        %v958 = vmax.f32 %v849, 0.0
        %v959 = vmax.f32 %v853, 0.0
        %v960 = vmax.f32 %v855, 0.0
        %v961 = vmax.f32 %v859, 0.0
        %v962 = vmax.f32 %v861, 0.0
        %v963 = vmax.f32 %v865, 0.0
        %v964 = vmax.f32 %v867, 0.0
        %v965 = vmax.f32 %v871, 0.0
        %v966 = vmax.f32 %v873, 0.0
        %v967 = vmax.f32 %v877, 0.0
        %v968 = vmax.f32 %v879, 0.0
        %v969 = vmax.f32 %v883, 0.0
        %v970 = vmax.f32 %v885, 0.0
        %v971 = vmax.f32 %v889, 0.0
        %v972 = vmax.f32 %v891, 0.0
        %v973 = vmax.f32 %v895, 0.0
        %v974 = vmax.f32 %v897, 0.0
        %v975 = vmax.f32 %v901, 0.0
        %v976 = vmax.f32 %v903, 0.0
        %v977 = vmax.f32 %v907, 0.0
        %v978 = vmax.f32 %v909, 0.0
        %v979 = vmax.f32 %v913, 0.0
        %v980 = vmax.f32 %v915, 0.0
        %v981 = vld [vmem:[%s3] sm:$0xff]
        %v982 = vld [vmem:[%s3 + $0x8] sm:$0xff]
        %v983 = vld [vmem:[%s3 + $0x10] sm:$0xff]
        %v984 = vld [vmem:[%s3 + $0x18] sm:$0xff]
        %v985 = vld [vmem:[%s3 + $0x20] sm:$0xff]
        %v986 = vld [vmem:[%s3 + $0x28] sm:$0xff]
        %v987 = vld [vmem:[%s3 + $0x30] sm:$0xff]
        %v988 = vld [vmem:[%s3 + $0x38] sm:$0xff]
        %v989 = vld [vmem:[%s3 + $0x40] sm:$0xff]
        %v990 = vld [vmem:[%s3 + $0x48] sm:$0xff]
        %v991 = vld [vmem:[%s3 + $0x50] sm:$0xff]
        %v992 = vld [vmem:[%s3 + $0x58] sm:$0xff]
        %v993 = vld [vmem:[%s3 + $0x60] sm:$0xff]
        %v994 = vld [vmem:[%s3 + $0x68] sm:$0xff]
        %v995 = vld [vmem:[%s3 + $0x70] sm:$0xff]
        %v996 = vld [vmem:[%s3 + $0x78] sm:$0xff]
        %v997 = vld [vmem:[%s3 + $0x80] sm:$0xff]
        %v998 = vld [vmem:[%s3 + $0x88] sm:$0xff]
        %v999 = vld [vmem:[%s3 + $0x90] sm:$0xff]
        %v1000 = vld [vmem:[%s3 + $0x98] sm:$0xff]
        %v1001 = vld [vmem:[%s3 + $0xa0] sm:$0xff]
        %v1002 = vld [vmem:[%s3 + $0xa8] sm:$0xff]
        %v1003 = vld [vmem:[%s3 + $0xb0] sm:$0xff]
        %v1004 = vld [vmem:[%s3 + $0xb8] sm:$0xff]
        %v1005 = vld [vmem:[%s3 + $0xc0] sm:$0xff]
        %v1006 = vld [vmem:[%s3 + $0xc8] sm:$0xff]
        %v1007 = vld [vmem:[%s3 + $0xd0] sm:$0xff]
        %v1008 = vld [vmem:[%s3 + $0xd8] sm:$0xff]
        %v1009 = vld [vmem:[%s3 + $0xe0] sm:$0xff]
        %v1010 = vld [vmem:[%s3 + $0xe8] sm:$0xff]
        %v1011 = vld [vmem:[%s3 + $0xf0] sm:$0xff]
        %v1012 = vld [vmem:[%s3 + $0xf8] sm:$0xff]
        %1013 = vmatprep.subr.mxu0 0.0
        %1014 = vmatpush1.msra.mxu0 %v981
        %1015 = vmatprep.subr.mxu0 0.0
        %1016 = vmatpush1.msra.mxu0 %v982
        %1017 = vmatprep.subr.mxu0 0.0
        %1018 = vmatpush1.msra.mxu0 %v983
        %1019 = vmatprep.subr.mxu0 0.0
        %1020 = vmatpush1.msra.mxu0 %v984
        %1021 = vmatprep.subr.mxu0 0.0
        %1022 = vmatpush1.msra.mxu0 %v985
        %1023 = vmatprep.subr.mxu0 0.0
        %1024 = vmatpush1.msra.mxu0 %v986
        %1025 = vmatprep.subr.mxu0 0.0
        %1026 = vmatpush1.msra.mxu0 %v987
        %1027 = vmatprep.subr.mxu0 0.0
        %1028 = vmatpush1.msra.mxu0 %v988
        %1029 = vmatprep.subr.mxu0 0.0
        %1030 = vmatpush1.msra.mxu0 %v989
        %1031 = vmatprep.subr.mxu0 0.0
        %1032 = vmatpush1.msra.mxu0 %v990
        %1033 = vmatprep.subr.mxu0 0.0
        %1034 = vmatpush1.msra.mxu0 %v991
        %1035 = vmatprep.subr.mxu0 0.0
        %1036 = vmatpush1.msra.mxu0 %v992
        %1037 = vmatprep.subr.mxu0 0.0
        %1038 = vmatpush1.msra.mxu0 %v993
        %1039 = vmatprep.subr.mxu0 0.0
        %1040 = vmatpush1.msra.mxu0 %v994
        %1041 = vmatprep.subr.mxu0 0.0
        %1042 = vmatpush1.msra.mxu0 %v995
        %1043 = vmatprep.subr.mxu0 0.0
        %1044 = vmatpush1.msra.mxu0 %v996
        %1045 = vmatprep.subr.mxu0 0.0
        %1046 = vmatpush1.msra.mxu0 %v997
        %1047 = vmatprep.subr.mxu0 0.0
        %1048 = vmatpush1.msra.mxu0 %v998
        %1049 = vmatprep.subr.mxu0 0.0
        %1050 = vmatpush1.msra.mxu0 %v999
        %1051 = vmatprep.subr.mxu0 0.0
        %1052 = vmatpush1.msra.mxu0 %v1000
        %1053 = vmatprep.subr.mxu0 0.0
        %1054 = vmatpush1.msra.mxu0 %v1001
        %1055 = vmatprep.subr.mxu0 0.0
        %1056 = vmatpush1.msra.mxu0 %v1002
        %1057 = vmatprep.subr.mxu0 0.0
        %1058 = vmatpush1.msra.mxu0 %v1003
        %1059 = vmatprep.subr.mxu0 0.0
        %1060 = vmatpush1.msra.mxu0 %v1004
        %1061 = vmatprep.subr.mxu0 0.0
        %1062 = vmatpush1.msra.mxu0 %v1005
        %1063 = vmatprep.subr.mxu0 0.0
        %1064 = vmatpush1.msra.mxu0 %v1006
        %1065 = vmatprep.subr.mxu0 0.0
        %1066 = vmatpush1.msra.mxu0 %v1007
        %1067 = vmatprep.subr.mxu0 0.0
        %1068 = vmatpush1.msra.mxu0 %v1008
        %1069 = vmatprep.subr.mxu0 0.0
        %1070 = vmatpush1.msra.mxu0 %v1009
        %1071 = vmatprep.subr.mxu0 0.0
        %1072 = vmatpush1.msra.mxu0 %v1010
        %1073 = vmatprep.subr.mxu0 0.0
        %1074 = vmatpush1.msra.mxu0 %v1011
        %1075 = vmatprep.subr.mxu0 0.0
        %1076 = vmatpush1.msra.mxu0 %v1012
        %1077 = vmatprep.mubr.f32.mxu0 %v918
        %1078 = vmatmul.mubr.f32.gmra.mrb[0].mxu0 %v917
        %v1079 = vpop.f32.mrb[0].mxu0
        %v1080 = vadd.f32 %v229, %v1079
        %v1081 = vpop.f32.mrb[0].mxu0
        %1082 = vmatprep.mubr.f32.mxu0 %v920
        %1083 = vmatmul.mubr.f32.gmra.mrb[0].mxu0 %v919
        %v1084 = vpop.f32.mrb[0].mxu0
        %v1085 = vadd.f32 %v229, %v1084
        %v1086 = vpop.f32.mrb[0].mxu0
        %1087 = vmatprep.mubr.f32.mxu0 %v922
        %1088 = vmatmul.mubr.f32.gmra.mrb[0].mxu0 %v921
        %v1089 = vpop.f32.mrb[0].mxu0
        %v1090 = vadd.f32 %v229, %v1089
        %v1091 = vpop.f32.mrb[0].mxu0
        %1092 = vmatprep.mubr.f32.mxu0 %v924
        %1093 = vmatmul.mubr.f32.gmra.mrb[0].mxu0 %v923
        %v1094 = vpop.f32.mrb[0].mxu0
        %v1095 = vadd.f32 %v229, %v1094
        %v1096 = vpop.f32.mrb[0].mxu0
        %1097 = vmatprep.mubr.f32.mxu0 %v926
        %1098 = vmatmul.mubr.f32.gmra.mrb[0].mxu0 %v925
        %v1099 = vpop.f32.mrb[0].mxu0
        %v1100 = vadd.f32 %v229, %v1099
        %v1101 = vpop.f32.mrb[0].mxu0
        %1102 = vmatprep.mubr.f32.mxu0 %v928
        %1103 = vmatmul.mubr.f32.gmra.mrb[0].mxu0 %v927
        %v1104 = vpop.f32.mrb[0].mxu0
        %v1105 = vadd.f32 %v229, %v1104
        %v1106 = vpop.f32.mrb[0].mxu0
        %1107 = vmatprep.mubr.f32.mxu0 %v930
        %1108 = vmatmul.mubr.f32.gmra.mrb[0].mxu0 %v929
        %v1109 = vpop.f32.mrb[0].mxu0
        %v1110 = vadd.f32 %v229, %v1109
        %v1111 = vpop.f32.mrb[0].mxu0
        %1112 = vmatprep.mubr.f32.mxu0 %v932
        %1113 = vmatmul.mubr.f32.gmra.mrb[0].mxu0 %v931
        %v1114 = vpop.f32.mrb[0].mxu0
        %v1115 = vadd.f32 %v229, %v1114
        %v1116 = vpop.f32.mrb[0].mxu0
        %1117 = vmatprep.mubr.f32.mxu0 %v934
        %1118 = vmatmul.mubr.f32.gmra.mrb[0].mxu0 %v933
        %v1119 = vpop.f32.mrb[0].mxu0
        %v1120 = vadd.f32 %v229, %v1119
        %v1121 = vpop.f32.mrb[0].mxu0
        %1122 = vmatprep.mubr.f32.mxu0 %v936
        %1123 = vmatmul.mubr.f32.gmra.mrb[0].mxu0 %v935
        %v1124 = vpop.f32.mrb[0].mxu0
        %v1125 = vadd.f32 %v229, %v1124
        %v1126 = vpop.f32.mrb[0].mxu0
        %1127 = vmatprep.mubr.f32.mxu0 %v938
        %1128 = vmatmul.mubr.f32.gmra.mrb[0].mxu0 %v937
        %v1129 = vpop.f32.mrb[0].mxu0
        %v1130 = vadd.f32 %v229, %v1129
        %v1131 = vpop.f32.mrb[0].mxu0
        %1132 = vmatprep.mubr.f32.mxu0 %v940
        %1133 = vmatmul.mubr.f32.gmra.mrb[0].mxu0 %v939
        %v1134 = vpop.f32.mrb[0].mxu0
        %v1135 = vadd.f32 %v229, %v1134
        %v1136 = vpop.f32.mrb[0].mxu0
        %1137 = vmatprep.mubr.f32.mxu0 %v942
        %1138 = vmatmul.mubr.f32.gmra.mrb[0].mxu0 %v941
        %v1139 = vpop.f32.mrb[0].mxu0
        %v1140 = vadd.f32 %v229, %v1139
        %v1141 = vpop.f32.mrb[0].mxu0
        %1142 = vmatprep.mubr.f32.mxu0 %v944
        %1143 = vmatmul.mubr.f32.gmra.mrb[0].mxu0 %v943
        %v1144 = vpop.f32.mrb[0].mxu0
        %v1145 = vadd.f32 %v229, %v1144
        %v1146 = vpop.f32.mrb[0].mxu0
        %1147 = vmatprep.mubr.f32.mxu0 %v946
        %1148 = vmatmul.mubr.f32.gmra.mrb[0].mxu0 %v945
        %v1149 = vpop.f32.mrb[0].mxu0
        %v1150 = vadd.f32 %v229, %v1149
        %v1151 = vpop.f32.mrb[0].mxu0
        %1152 = vmatprep.mubr.f32.mxu0 %v948
        %1153 = vmatmul.mubr.f32.gmra.mrb[0].mxu0 %v947
        %v1154 = vpop.f32.mrb[0].mxu0
        %v1155 = vadd.f32 %v229, %v1154
        %v1156 = vpop.f32.mrb[0].mxu0
        %1157 = vmatprep.mubr.f32.mxu0 %v950
        %1158 = vmatmul.mubr.f32.gmra.mrb[0].mxu0 %v949
        %v1159 = vpop.f32.mrb[0].mxu0
        %v1160 = vadd.f32 %v229, %v1159
        %v1161 = vpop.f32.mrb[0].mxu0
        %1162 = vmatprep.mubr.f32.mxu0 %v952
        %1163 = vmatmul.mubr.f32.gmra.mrb[0].mxu0 %v951
        %v1164 = vpop.f32.mrb[0].mxu0
        %v1165 = vadd.f32 %v229, %v1164
        %v1166 = vpop.f32.mrb[0].mxu0
        %1167 = vmatprep.mubr.f32.mxu0 %v954
        %1168 = vmatmul.mubr.f32.gmra.mrb[0].mxu0 %v953
        %v1169 = vpop.f32.mrb[0].mxu0
        %v1170 = vadd.f32 %v229, %v1169
        %v1171 = vpop.f32.mrb[0].mxu0
        %1172 = vmatprep.mubr.f32.mxu0 %v956
        %1173 = vmatmul.mubr.f32.gmra.mrb[0].mxu0 %v955
        %v1174 = vpop.f32.mrb[0].mxu0
        %v1175 = vadd.f32 %v229, %v1174
        %v1176 = vpop.f32.mrb[0].mxu0
        %1177 = vmatprep.mubr.f32.mxu0 %v958
        %1178 = vmatmul.mubr.f32.gmra.mrb[0].mxu0 %v957
        %v1179 = vpop.f32.mrb[0].mxu0
        %v1180 = vadd.f32 %v229, %v1179
        %v1181 = vpop.f32.mrb[0].mxu0
        %1182 = vmatprep.mubr.f32.mxu0 %v960
        %1183 = vmatmul.mubr.f32.gmra.mrb[0].mxu0 %v959
        %v1184 = vpop.f32.mrb[0].mxu0
        %v1185 = vadd.f32 %v229, %v1184
        %v1186 = vpop.f32.mrb[0].mxu0
        %1187 = vmatprep.mubr.f32.mxu0 %v962
        %1188 = vmatmul.mubr.f32.gmra.mrb[0].mxu0 %v961
        %v1189 = vpop.f32.mrb[0].mxu0
        %v1190 = vadd.f32 %v229, %v1189
        %v1191 = vpop.f32.mrb[0].mxu0
        %1192 = vmatprep.mubr.f32.mxu0 %v964
        %1193 = vmatmul.mubr.f32.gmra.mrb[0].mxu0 %v963
        %v1194 = vpop.f32.mrb[0].mxu0
        %v1195 = vadd.f32 %v229, %v1194
        %v1196 = vpop.f32.mrb[0].mxu0
        %1197 = vmatprep.mubr.f32.mxu0 %v966
        %1198 = vmatmul.mubr.f32.gmra.mrb[0].mxu0 %v965
        %v1199 = vpop.f32.mrb[0].mxu0
        %v1200 = vadd.f32 %v229, %v1199
        %v1201 = vpop.f32.mrb[0].mxu0
        %1202 = vmatprep.mubr.f32.mxu0 %v968
        %1203 = vmatmul.mubr.f32.gmra.mrb[0].mxu0 %v967
        %v1204 = vpop.f32.mrb[0].mxu0
        %v1205 = vadd.f32 %v229, %v1204
        %v1206 = vpop.f32.mrb[0].mxu0
        %1207 = vmatprep.mubr.f32.mxu0 %v970
        %1208 = vmatmul.mubr.f32.gmra.mrb[0].mxu0 %v969
        %v1209 = vpop.f32.mrb[0].mxu0
        %v1210 = vadd.f32 %v229, %v1209
        %v1211 = vpop.f32.mrb[0].mxu0
        %1212 = vmatprep.mubr.f32.mxu0 %v972
        %1213 = vmatmul.mubr.f32.gmra.mrb[0].mxu0 %v971
        %v1214 = vpop.f32.mrb[0].mxu0
        %v1215 = vadd.f32 %v229, %v1214
        %v1216 = vpop.f32.mrb[0].mxu0
        %1217 = vmatprep.mubr.f32.mxu0 %v974
        %1218 = vmatmul.mubr.f32.gmra.mrb[0].mxu0 %v973
        %v1219 = vpop.f32.mrb[0].mxu0
        %v1220 = vadd.f32 %v229, %v1219
        %v1221 = vpop.f32.mrb[0].mxu0
        %1222 = vmatprep.mubr.f32.mxu0 %v976
        %1223 = vmatmul.mubr.f32.gmra.mrb[0].mxu0 %v975
        %v1224 = vpop.f32.mrb[0].mxu0
        %v1225 = vadd.f32 %v229, %v1224
        %v1226 = vpop.f32.mrb[0].mxu0
        %1227 = vmatprep.mubr.f32.mxu0 %v978
        %1228 = vmatmul.mubr.f32.gmra.mrb[0].mxu0 %v977
        %v1229 = vpop.f32.mrb[0].mxu0
        %v1230 = vadd.f32 %v229, %v1229
        %v1231 = vpop.f32.mrb[0].mxu0
        %1232 = vmatprep.mubr.f32.mxu0 %v980
        %1233 = vmatmul.mubr.f32.gmra.mrb[0].mxu0 %v979
        %v1234 = vpop.f32.mrb[0].mxu0
        %v1235 = vadd.f32 %v229, %v1234
        %v1236 = vpop.f32.mrb[0].mxu0
        %1237 = vdwg.mxu0
        %1238 = vst [vmem:[%s218] sm:$0xff] %v1080
        %1239 = vst [vmem:[%s218 + $0x8] sm:$0xff] %v1085
        %1240 = vst [vmem:[%s218 + $0x10] sm:$0xff] %v1090
        %1241 = vst [vmem:[%s218 + $0x18] sm:$0xff] %v1095
        %1242 = vst [vmem:[%s218 + $0x20] sm:$0xff] %v1100
        %1243 = vst [vmem:[%s218 + $0x28] sm:$0xff] %v1105
        %1244 = vst [vmem:[%s218 + $0x30] sm:$0xff] %v1110
        %1245 = vst [vmem:[%s218 + $0x38] sm:$0xff] %v1115
        %1246 = vst [vmem:[%s218 + $0x40] sm:$0xff] %v1120
        %1247 = vst [vmem:[%s218 + $0x48] sm:$0xff] %v1125
        %1248 = vst [vmem:[%s218 + $0x50] sm:$0xff] %v1130
        %1249 = vst [vmem:[%s218 + $0x58] sm:$0xff] %v1135
        %1250 = vst [vmem:[%s218 + $0x60] sm:$0xff] %v1140
        %1251 = vst [vmem:[%s218 + $0x68] sm:$0xff] %v1145
        %1252 = vst [vmem:[%s218 + $0x70] sm:$0xff] %v1150
        %1253 = vst [vmem:[%s218 + $0x78] sm:$0xff] %v1155
        %1254 = vst [vmem:[%s218 + $0x80] sm:$0xff] %v1160
        %1255 = vst [vmem:[%s218 + $0x88] sm:$0xff] %v1165
        %1256 = vst [vmem:[%s218 + $0x90] sm:$0xff] %v1170
        %1257 = vst [vmem:[%s218 + $0x98] sm:$0xff] %v1175
        %1258 = vst [vmem:[%s218 + $0xa0] sm:$0xff] %v1180
        %1259 = vst [vmem:[%s218 + $0xa8] sm:$0xff] %v1185
        %1260 = vst [vmem:[%s218 + $0xb0] sm:$0xff] %v1190
        %1261 = vst [vmem:[%s218 + $0xb8] sm:$0xff] %v1195
        %1262 = vst [vmem:[%s218 + $0xc0] sm:$0xff] %v1200
        %1263 = vst [vmem:[%s218 + $0xc8] sm:$0xff] %v1205
        %1264 = vst [vmem:[%s218 + $0xd0] sm:$0xff] %v1210
        %1265 = vst [vmem:[%s218 + $0xd8] sm:$0xff] %v1215
        %1266 = vst [vmem:[%s218 + $0xe0] sm:$0xff] %v1220
        %1267 = vst [vmem:[%s218 + $0xe8] sm:$0xff] %v1225
        %1268 = vst [vmem:[%s218 + $0xf0] sm:$0xff] %v1230
        %1269 = vst [vmem:[%s218 + $0xf8] sm:$0xff] %v1235
        %s1270 = sand.u32 %s137, 1
        %s1271 = scalar_lea.sflag [#allocation3], %s1270
        %s1272 = sand.u32 %s137, 1
        %s1273 = smul.addr %s1272, 256
        %s1274 = scalar_lea.vmem [#allocation2], %s1273
        // Predicated region
        $region41: #{tpu_custom_call.1} parent=39 // pred_check
          %p1275 = pneg %p147
        $region42: #{tpu_custom_call.1} parent=39 // pred_check_branch
          %1277 = sbr.rel (%p1275) target = $region44
        $region43: #{tpu_custom_call.1} parent=39 // pred_region
          %s1278 = smul.u32 32, %s19
          %s1280 = ssub.s32 4096, 4096
          %1281 = vsyncadd %s1271, %s1280
          %s1282 = smul.addr %s1278, 128
          %s1283 = scalar_lea.hbm %s5, %s1282
          %s1284 = sshll.u32 %s1274, 4
          %s1285 = int_to_ptr.vmem [resolvable:$true] %s1284
          %1290 = dma.vmem_to_hbm [thread:$0]  %s1285, 4096, %s1283, %s1271, 128, 128, 8
        $region44: #{tpu_custom_call.1} parent=39 // pred_fallthru
          _
      $region40: #{tpu_custom_call.1} parent=5 // pred_fallthru
        _
      %p1291 = scmp.le.s32.totalorder 2, %s14
      // Predicated region
      $region45: #{tpu_custom_call.1} parent=5 // pred_check
        %p1292 = pneg %p1291
      $region46: #{tpu_custom_call.1} parent=5 // pred_check_branch
        %1294 = sbr.rel (%p1292) target = $region48
      $region47: #{tpu_custom_call.1} parent=5 // pred_region
        %s1295 = ssub.s32 %s14, 2
        // Predicated region
        $region49: #{tpu_custom_call.1} parent=47 // pred_check
          %p1296 = pneg %p153
        $region50: #{tpu_custom_call.1} parent=47 // pred_check_branch
          %1298 = sbr.rel (%p1296) target = $region52
        $region51: #{tpu_custom_call.1} parent=47 // pred_region
          %s1299 = sand.u32 %s138, 1
          %s1300 = scalar_lea.sflag [#allocation3], %s1299
          %s1301 = sand.u32 %s138, 1
          %s1302 = smul.addr %s1301, 256
          %s1303 = scalar_lea.vmem [#allocation2], %s1302
          %1304 = dma.done %s1300, 4096
        $region52: #{tpu_custom_call.1} parent=47 // pred_fallthru
          _
      $region48: #{tpu_custom_call.1} parent=5 // pred_fallthru
        _
    $region6: #{tpu_custom_call.1} parent=1 // loop_footer
      %s18 = sadd.s32 1, %s14
    $region7: #{tpu_custom_call.1} parent=1 // loop_footer_branch
      %13 = sbr.rel target = $region3
    $region8: #{tpu_custom_call.1} parent=1 // loop_exit
      _
    %1305 = vsyncpa [#allocation3], 1
    %s1306 = scalar_lea.sflag [#allocation3], 1
    %1307 = vsyncpa %s1306, 1

</llo_original>
